<compile_context>
chip_gen: v5e
topology: v5e:2x2
jax: 0.10.0
libtpu: 0.0.40
codegen_flags: <defaults>
</compile_context>

<pallas_src>
import math

import jax
import jax.numpy as jnp
from jax.experimental import pallas as pl
from jax.experimental.pallas import tpu as pltpu


def _round_up(x, m):
    return (x + m - 1) // m * m


def _vmem_capacity_bytes():
    """Per-TensorCore VMEM capacity; conservative fallback = v7x (64 MiB)."""
    try:
        info = pltpu.get_tpu_info()
        cap = getattr(info, "vmem_capacity_bytes", None)
        if cap:
            return int(cap)
    except Exception:
        pass
    return 64 * 2**20


def _pick_tm(rows, sub, tm_target):
    """Row tile: large & sublane-aligned; prefer a divisor of `rows` so the
    wrapper never has to materialize a padded copy of x just for a row tail."""
    tm = _round_up(min(tm_target, _round_up(rows, sub)), sub)
    if rows % tm == 0:
        return tm, rows
    for cand in range(tm - sub, 0, -sub):          # divisor, not too small
        if rows % cand == 0 and 4 * cand >= tm:
            return cand, rows
    return tm, _round_up(rows, tm)                 # padding fallback (rare)


# ----------------------------------------------------------------------------
# Kernels
# ----------------------------------------------------------------------------
def _resident_kernel(x_ref, w_ref, b_ref, o_ref):
    """out = x @ W + b + x on one (tm, Dp) row tile.

    W and bias have constant block index -> they are DMA'd once and stay
    resident in VMEM across the whole row grid. The residual is the x block
    itself (no duplicate HBM read of x).
    """
    acc = jnp.dot(x_ref[...], w_ref[...], preferred_element_type=jnp.float32)
    acc = acc + b_ref[...].astype(jnp.float32) + x_ref[...].astype(jnp.float32)
    o_ref[...] = acc.astype(o_ref.dtype)


def _ktiled_kernel(x_ref, w_ref, b_ref, o_ref, acc_ref):
    """Large-D path: grid (i, j, k), reduction over K in tiles of T (== tn).

    x_ref : (tm, T) columns [k*T, (k+1)*T)
    w_ref : (T, T)  W[k*T:(k+1)*T, j*T:(j+1)*T]
    b_ref : (1, T)  bias[j*T:(j+1)*T]
    o_ref : (tm, T) output tile (i, j)
    acc_ref: (tm, T) f32 accumulator scratch
    """
    j = pl.program_id(1)
    k = pl.program_id(2)

    @pl.when(k == 0)
    def _():
        acc_ref[...] = jnp.zeros_like(acc_ref)

    acc_ref[...] += jnp.dot(x_ref[...], w_ref[...],
                            preferred_element_type=jnp.float32)

    # Residual add: because tk == tn, the x block at k == j holds exactly the
    # output-column slice of x -> no duplicate residual input, no dyn slicing.
    @pl.when(k == j)
    def _():
        acc_ref[...] += x_ref[...].astype(jnp.float32)

    @pl.when(k == pl.num_programs(2) - 1)
    def _():
        o_ref[...] = (acc_ref[...]
                      + b_ref[...].astype(jnp.float32)).astype(o_ref.dtype)


# ----------------------------------------------------------------------------
# Wrapper
# ----------------------------------------------------------------------------
def residual_linear(x, w, b, *, tm_target=512, force_k_grid=False,
                    feature_tile=None):
    """Residule(nn.Linear(D, D)): out = fn(x) + x = x @ W + b + x, fused.

    x: (..., D); w: (D, D) stored as (in_features, out_features); b: (D,).
    NOTE: PyTorch nn.Linear stores weight as (out, in) and computes x @ W.T;
    transpose it once at load time before passing it here.
    """
    *lead, D = x.shape
    rows = math.prod(lead) if lead else 1
    assert w.shape == (D, D) and b.shape == (D,)

    isz = jnp.dtype(x.dtype).itemsize
    wsz = jnp.dtype(w.dtype).itemsize
    sub = 16 if x.dtype == jnp.bfloat16 else 8

    # Lane-dense feature dim (multiple of 128): unmasked stores, full MXU tiles.
    Dp = _round_up(D, 128)

    cap = _vmem_capacity_bytes()
    budget = int(0.8 * cap)          # headroom for Mosaic internal scratch

    # ---- regime / tile selection -------------------------------------------
    regime = None
    tm = rows_p = est = None
    if not force_k_grid:
        # Resident-weight mode: fits when 2*Dp*Dp*wsz (+ x/out tiles) <= budget.
        for tm_t in (tm_target, tm_target // 2, tm_target // 4):
            tm_c, rows_c = _pick_tm(rows, sub, max(tm_t, sub))
            e = (4 * tm_c * Dp * isz             # x + out tiles, double-buffered
                 + 2 * (Dp * Dp + Dp) * wsz      # resident W + bias (2 buffers)
                 + tm_c * Dp * 4)                # f32 matmul intermediate
            if e <= budget:
                regime, tm, rows_p, est = "resident", tm_c, rows_c, e
                break
    if regime is None:
        # K-tiled mode: VMEM bounded independent of D (v7x-safe for huge D).
        tm, rows_p = _pick_tm(rows, sub, tm_target)
        if feature_tile is not None:
            T = int(feature_tile)
        else:
            T = 128
            for cand in (512, 256):              # 256-wide MXU friendly
                if Dp % cand == 0:
                    T = cand
                    break
        assert Dp % T == 0 and T % 128 == 0
        est = 4 * tm * T * isz + 2 * (T * T + T) * wsz + tm * T * 4
        regime = "ktiled"

    # Give the second TensorCore (v7x megacore) work if there is only one
    # row tile and it can be split cleanly.
    if regime == "resident" and rows_p // tm == 1 and tm % (2 * sub) == 0:
        tm //= 2

    vmem_limit = int(min(0.9 * cap, max(32 * 2**20, 1.5 * est)))

    # ---- wrapper-side padding (only when actually needed) -------------------
    x2 = x.reshape(rows, D)
    if rows_p != rows or Dp != D:
        x2 = jnp.pad(x2, ((0, rows_p - rows), (0, Dp - D)))
    if Dp != D:
        w2 = jnp.pad(w, ((0, Dp - D), (0, Dp - D)))
        b2 = jnp.pad(b.reshape(1, D), ((0, 0), (0, Dp - D)))
    else:
        w2 = w
        b2 = b.reshape(1, D)

    if regime == "resident":
        out2 = pl.pallas_call(
            _resident_kernel,
            out_shape=jax.ShapeDtypeStruct((rows_p, Dp), x.dtype),
            grid_spec=pltpu.PrefetchScalarGridSpec(
                num_scalar_prefetch=0,
                grid=(rows_p // tm,),
                in_specs=[
                    pl.BlockSpec((tm, Dp), lambda i: (i, 0)),   # x row tile
                    pl.BlockSpec((Dp, Dp), lambda i: (0, 0)),   # W (resident)
                    pl.BlockSpec((1, Dp), lambda i: (0, 0)),    # bias (resident)
                ],
                out_specs=pl.BlockSpec((tm, Dp), lambda i: (i, 0)),
            ),
            compiler_params=pltpu.CompilerParams(
                dimension_semantics=("parallel",),
                vmem_limit_bytes=vmem_limit,
            ),
        )(x2, w2, b2)
    else:
        nj = Dp // T
        out2 = pl.pallas_call(
            _ktiled_kernel,
            out_shape=jax.ShapeDtypeStruct((rows_p, Dp), x.dtype),
            grid_spec=pltpu.PrefetchScalarGridSpec(
                num_scalar_prefetch=0,
                grid=(rows_p // tm, nj, nj),                 # (i, j, k), k last
                in_specs=[
                    pl.BlockSpec((tm, T), lambda i, j, k: (i, k)),  # x K-slice
                    pl.BlockSpec((T, T), lambda i, j, k: (k, j)),   # W tile
                    pl.BlockSpec((1, T), lambda i, j, k: (0, j)),   # bias tile
                ],
                out_specs=pl.BlockSpec((tm, T), lambda i, j, k: (i, j)),
                scratch_shapes=[pltpu.VMEM((tm, T), jnp.float32)],
            ),
            compiler_params=pltpu.CompilerParams(
                dimension_semantics=("parallel", "parallel", "arbitrary"),
                vmem_limit_bytes=vmem_limit,
            ),
        )(x2, w2, b2)

    if rows_p != rows or Dp != D:
        out2 = out2[:rows, :D]
    return out2.reshape(*lead, D)


def residual_linear_reference(x, w, b):
    acc = jnp.dot(x.astype(jnp.float32), w.astype(jnp.float32),
                  preferred_element_type=jnp.float32)
    return (acc + b.astype(jnp.float32) + x.astype(jnp.float32)).astype(x.dtype)


if __name__ == "__main__":
    key = jax.random.PRNGKey(0)
    kx, kw, kb = jax.random.split(key, 3)

    # --- primary check: module-scale shapes (resident-weight path) ----------
    B, S, D = 2, 8, 32
    x = jax.random.normal(kx, (B, S, D), dtype=jnp.float32)
    # TODO(synk): `fn` is arbitrary in the PyTorch Residule module; it is fixed
    # to a Linear(D, D) here so the residual fusion has a concrete body.
    w = jax.random.normal(kw, (D, D), dtype=jnp.float32) / jnp.sqrt(D)
    b = 0.1 * jax.random.normal(kb, (D,), dtype=jnp.float32)

    out = jax.block_until_ready(residual_linear(x, w, b))
    ref = residual_linear_reference(x, w, b)
    assert out.shape == (B, S, D)
    assert jnp.allclose(out, ref, atol=1e-4, rtol=1e-4), "mismatch (resident)"

    # --- secondary check: exercise the K-tiled accumulator path -------------
    B2, S2, D2 = 2, 16, 256
    kx2, kw2, kb2 = jax.random.split(jax.random.PRNGKey(1), 3)
    xb = jax.random.normal(kx2, (B2, S2, D2), dtype=jnp.float32)
    wb = jax.random.normal(kw2, (D2, D2), dtype=jnp.float32) / jnp.sqrt(D2)
    bb = 0.1 * jax.random.normal(kb2, (D2,), dtype=jnp.float32)
    out2 = jax.block_until_ready(
        residual_linear(xb, wb, bb, force_k_grid=True, feature_tile=128))
    ref2 = residual_linear_reference(xb, wb, bb)
    assert out2.shape == (B2, S2, D2)
    assert jnp.allclose(out2, ref2, atol=1e-2, rtol=1e-2), "mismatch (k-tiled)"

    print("KERNEL_OK")
</pallas_src>

<mosaic_0001>
module attributes {stable_mosaic.version = 11 : i64} {
  func.func @_resident_kernel(%arg0: i32, %arg1: memref<8x128xf32, #tpu.memory_space<vmem>>, %arg2: memref<128x128xf32, #tpu.memory_space<vmem>>, %arg3: memref<1x128xf32, #tpu.memory_space<vmem>>, %arg4: memref<8x128xf32, #tpu.memory_space<vmem>>) attributes {dimension_semantics = [#tpu.dimension_semantics<parallel>], iteration_bounds = array<i64: 2>, scalar_prefetch = 0 : i64, scratch_operands = 0 : i64, tpu.core_type = #tpu.core_type<tc>, window_params = [{transform_indices = @transform_0, window_bounds = array<i64: 8, 128>}, {pipeline_mode = #tpu.pipeline_mode<synchronous>, transform_indices = @transform_1, window_bounds = array<i64: 128, 128>}, {pipeline_mode = #tpu.pipeline_mode<synchronous>, transform_indices = @transform_2, window_bounds = array<i64: 1, 128>}, {transform_indices = @transform_3, window_bounds = array<i64: 8, 128>}]} {
    %c0 = arith.constant 0 : index
    %c0_0 = arith.constant 0 : index
    %0 = vector.load %arg1[%c0, %c0_0] : memref<8x128xf32, #tpu.memory_space<vmem>>, vector<8x128xf32>
    %c0_1 = arith.constant 0 : index
    %c0_2 = arith.constant 0 : index
    %1 = vector.load %arg2[%c0_1, %c0_2] : memref<128x128xf32, #tpu.memory_space<vmem>>, vector<128x128xf32>
    %cst = arith.constant dense<0.000000e+00> : vector<8x128xf32>
    %2 = tpu.matmul %0, %1, %cst {dimension_numbers = #tpu.dot_dimension_numbers<[1], [0], [0], [1], [0, 0, 1, 1], [], []>} : vector<8x128xf32>, vector<128x128xf32>, vector<8x128xf32> -> vector<8x128xf32>
    %c0_3 = arith.constant 0 : index
    %c0_4 = arith.constant 0 : index
    %3 = vector.load %arg3[%c0_3, %c0_4] : memref<1x128xf32, #tpu.memory_space<vmem>>, vector<1x128xf32>
    %4 = vector.broadcast %3 : vector<1x128xf32> to vector<8x128xf32>
    %5 = arith.addf %2, %4 : vector<8x128xf32>
    %c0_5 = arith.constant 0 : index
    %c0_6 = arith.constant 0 : index
    %6 = vector.load %arg1[%c0_5, %c0_6] : memref<8x128xf32, #tpu.memory_space<vmem>>, vector<8x128xf32>
    %7 = arith.addf %5, %6 : vector<8x128xf32>
    %c0_7 = arith.constant 0 : index
    %c0_8 = arith.constant 0 : index
    %8 = vector.load %arg4[%c0_7, %c0_8] : memref<8x128xf32, #tpu.memory_space<vmem>>, vector<8x128xf32>
    tpu.vector_store %arg4[%c0_7, %c0_8], %7 {strides = array<i32>} : memref<8x128xf32, #tpu.memory_space<vmem>>, vector<8x128xf32>,
    return
  }
  func.func @transform_0(%arg0: i32) -> (i32, i32) {
    %c0_i32 = arith.constant 0 : i32
    %c0_i32_0 = arith.constant 0 : i32
    return %arg0, %c0_i32 : i32, i32
  }
  func.func @transform_1(%arg0: i32) -> (i32, i32) {
    %c0_i32 = arith.constant 0 : i32
    %c0_i32_0 = arith.constant 0 : i32
    %c0_i32_1 = arith.constant 0 : i32
    return %c0_i32, %c0_i32_0 : i32, i32
  }
  func.func @transform_2(%arg0: i32) -> (i32, i32) {
    %c0_i32 = arith.constant 0 : i32
    %c0_i32_0 = arith.constant 0 : i32
    %c0_i32_1 = arith.constant 0 : i32
    return %c0_i32, %c0_i32_0 : i32, i32
  }
  func.func @transform_3(%arg0: i32) -> (i32, i32) {
    %c0_i32 = arith.constant 0 : i32
    %c0_i32_0 = arith.constant 0 : i32
    return %arg0, %c0_i32 : i32, i32
  }
}

</mosaic_0001>

<llo_original>
// kernel: tpu_custom_call.1
$region0: #{tpu_custom_call.1}
  #allocation0 [shape = 'u32[]', space=smem, size = 0x4, offset = 0x4, fixed_abs, tag = 'smem constant byte address 0x4 - core index']
  #allocation1 [shape = 'u32[72,128]{1,0:T(1,128)}', space=vmem, size = 0x9000, scoped, tag = 'internal scratch']
  %s0 = inlined_call_operand.hbm [shape: f32[16,128], index: 0, kind: input, shape index: {}]
  %s1 = inlined_call_operand.hbm [shape: f32[128,128], index: 1, kind: input, shape index: {}]
  %s2 = inlined_call_operand.vmem [shape: f32[1,128], index: 2, kind: input, shape index: {}]
  %s3 = inlined_call_operand.hbm [shape: f32[16,128], index: 3, kind: output, shape index: {}]
  %s4 = sld [smem:[#allocation0]]
  $region53: #{tpu_custom_call.1} parent=0
    _
  %s6 = ssub.s32 1, %s4
  %s7 = scalar_select 0, %s6, %s4
  $region1: #{tpu_custom_call.1} parent=0
    #allocation2 [shape = 'u8[8192]{0}', space=vmem, size = 0x2000, scoped, tag = 'input window, operand 0']
    #allocation3 [shape = 's32[2]{0}', space=sflag, size = 0x8, scoped, tag = 'scoped memory for tpu_custom_call.1']
    #allocation4 [shape = 's32[2]{0}', space=sflag, size = 0x8, scoped, tag = 'scoped memory for tpu_custom_call.1']
    #allocation5 [shape = 'u8[65536]{0}', space=vmem, size = 0x10000, scoped, tag = 'input window, operand 1, single buffered']
    #allocation6 [shape = 's32[1]{0}', space=sflag, size = 0x4, scoped, tag = 'scoped memory for tpu_custom_call.1']
    #allocation7 [shape = 'u8[8192]{0}', space=vmem, size = 0x2000, scoped, tag = 'output window, operand 0']
    %8 = vsyncpa [#allocation3], 0
    %s9 = scalar_lea.sflag [#allocation3], 1
    %10 = vsyncpa %s9, 0
    %11 = vsyncpa [#allocation6], 0
    %12 = vsyncpa [#allocation4], 0
    %s13 = scalar_lea.sflag [#allocation4], 1
    %14 = vsyncpa %s13, 0
    loop: start=0, step=1, limit=4
    $region2: #{tpu_custom_call.1} parent=1 // loop_pre_header
      _
    $region3: #{tpu_custom_call.1} parent=1 // loop_header
      %s16 = sphi 0, %s20
      %p17 = scmp.ge.s32.totalorder %s16, 4
      %s26 = sphi 0, %s28
      %s29 = sphi 0, %s26
      %s30 = sphi 0, %s29
      %s46 = sphi 0, %s30
      %s50 = sphi 0, %s50
      %s52 = sphi 0, %s50
      %s53 = sphi 0, %s52
      %s67 = sphi 0, %s53
      %s71 = sphi 0, %s71
      %s73 = sphi 0, %s71
      %s74 = sphi 0, %s73
      %s88 = sphi 0, %s74
      %s94 = sphi 0, %s96
      %s97 = sphi 0, %s94
      %s98 = sphi 0, %s97
      %s114 = sphi 0, %s98
    $region4: #{tpu_custom_call.1} parent=1 // loop_header_branch
      %19 = sbr.rel (%p17) target = $region8
    $region5: #{tpu_custom_call.1} parent=1 // loop_body
      %s21 = ssub.s32 %s16, 1
      %s22 = ssub.s32 %s16, 2
      %s23 = sadd.s32 %s16, 1
      %s24 = ssub.s32 %s16, %s23
      %p25 = scmp.eq.s32.totalorder %s24, 0
      %s27 = sadd.s32 %s26, 1
      %s28 = scalar_select %p25, %s26, %s27
      %p31 = pneg %p25
      %p32 = scmp.eq.s32.totalorder %s16, 1
      %p33 = por %p31, %p32
      %p34 = scmp.ne.s32.totalorder %s26, %s29
      %p35 = scmp.eq.s32.totalorder %s16, 0
      %p36 = por %p34, %p35
      %p37 = scmp.ne.s32.totalorder %s26, %s29
      %p38 = scmp.eq.s32.totalorder %s21, 1
      %p39 = por %p37, %p38
      %p40 = scmp.ne.s32.totalorder %s29, %s30
      %p41 = scmp.eq.s32.totalorder %s21, 0
      %p42 = por %p40, %p41
      %p43 = scmp.ne.s32.totalorder %s29, %s30
      %p44 = scmp.eq.s32.totalorder %s22, 1
      %p45 = por %p43, %p44
      %p47 = scmp.ne.s32.totalorder %s30, %s46
      %p48 = scmp.eq.s32.totalorder %s22, 0
      %p49 = por %p47, %p48
      %s51 = sadd.s32 %s50, 1
      %p54 = scmp.eq.s32.totalorder %s16, 1
      %p55 = scmp.ne.s32.totalorder %s50, %s52
      %p56 = scmp.eq.s32.totalorder %s16, 0
      %p57 = por %p55, %p56
      %p58 = scmp.ne.s32.totalorder %s50, %s52
      %p59 = scmp.eq.s32.totalorder %s21, 1
      %p60 = por %p58, %p59
      %p61 = scmp.ne.s32.totalorder %s52, %s53
      %p62 = scmp.eq.s32.totalorder %s21, 0
      %p63 = por %p61, %p62
      %p64 = scmp.ne.s32.totalorder %s52, %s53
      %p65 = scmp.eq.s32.totalorder %s22, 1
      %p66 = por %p64, %p65
      %p68 = scmp.ne.s32.totalorder %s53, %s67
      %p69 = scmp.eq.s32.totalorder %s22, 0
      %p70 = por %p68, %p69
      %s72 = sadd.s32 %s71, 1
      %p75 = scmp.eq.s32.totalorder %s16, 1
      %p76 = scmp.ne.s32.totalorder %s71, %s73
      %p77 = scmp.eq.s32.totalorder %s16, 0
      %p78 = por %p76, %p77
      %p79 = scmp.ne.s32.totalorder %s71, %s73
      %p80 = scmp.eq.s32.totalorder %s21, 1
      %p81 = por %p79, %p80
      %p82 = scmp.ne.s32.totalorder %s73, %s74
      %p83 = scmp.eq.s32.totalorder %s21, 0
      %p84 = por %p82, %p83
      %p85 = scmp.ne.s32.totalorder %s73, %s74
      %p86 = scmp.eq.s32.totalorder %s22, 1
      %p87 = por %p85, %p86
      %p89 = scmp.ne.s32.totalorder %s74, %s88
      %p90 = scmp.eq.s32.totalorder %s22, 0
      %p91 = por %p89, %p90
      %s92 = ssub.s32 %s16, %s23
      %p93 = scmp.eq.s32.totalorder %s92, 0
      %s95 = sadd.s32 %s94, 1
      %s96 = scalar_select %p93, %s94, %s95
      %p99 = pneg %p93
      %p100 = scmp.eq.s32.totalorder %s16, 1
      %p101 = por %p99, %p100
      %p102 = scmp.ne.s32.totalorder %s94, %s97
      %p103 = scmp.eq.s32.totalorder %s16, 0
      %p104 = por %p102, %p103
      %p105 = scmp.ne.s32.totalorder %s94, %s97
      %p106 = scmp.eq.s32.totalorder %s21, 1
      %p107 = por %p105, %p106
      %p108 = scmp.ne.s32.totalorder %s97, %s98
      %p109 = scmp.eq.s32.totalorder %s21, 0
      %p110 = por %p108, %p109
      %p111 = scmp.ne.s32.totalorder %s97, %s98
      %p112 = scmp.eq.s32.totalorder %s22, 1
      %p113 = por %p111, %p112
      %p115 = scmp.ne.s32.totalorder %s98, %s114
      %p116 = scmp.eq.s32.totalorder %s22, 0
      %p117 = por %p115, %p116
      %p118 = scmp.le.s32.totalorder 1, %s16
      %p119 = scmp.lt.s32.totalorder %s16, 3
      %p120 = pnand %p118, %p119
      %p121 = pneg %p120
      // Predicated region
      $region9: #{tpu_custom_call.1} parent=5 // pred_check
        _
      $region10: #{tpu_custom_call.1} parent=5 // pred_check_branch
        %123 = sbr.rel (%p120) target = $region12
      $region11: #{tpu_custom_call.1} parent=5 // pred_region
        %s124 = ssub.s32 %s16, 1
        // Predicated region
        $region13: #{tpu_custom_call.1} parent=11 // pred_check
          %p125 = pneg %p63
        $region14: #{tpu_custom_call.1} parent=11 // pred_check_branch
          %127 = sbr.rel (%p125) target = $region16
        $region15: #{tpu_custom_call.1} parent=11 // pred_region
          %129 = vsyncadd [#allocation6], 0
          %s130 = sshll.u32 %s1, 4
          %s131 = int_to_ptr.hbm [resolvable:$true] %s130
          %s132 = sshll.u32 [#allocation5], 4
          %s133 = int_to_ptr.vmem [resolvable:$true] %s132
          %138 = dma.hbm_to_vmem [thread:$0]  %s131, 2048, %s133, [#allocation6], 128, 128, 8
        $region16: #{tpu_custom_call.1} parent=11 // pred_fallthru
          _
        // Predicated region
        $region17: #{tpu_custom_call.1} parent=11 // pred_check
          %p139 = pneg %p84
        $region18: #{tpu_custom_call.1} parent=11 // pred_check_branch
          %141 = sbr.rel (%p139) target = $region20
        $region19: #{tpu_custom_call.1} parent=11 // pred_region
          _
        $region20: #{tpu_custom_call.1} parent=11 // pred_fallthru
          _
      $region12: #{tpu_custom_call.1} parent=5 // pred_fallthru
        _
      %p142 = scmp.lt.s32.totalorder %s16, 2
      // Predicated region
      $region21: #{tpu_custom_call.1} parent=5 // pred_check
        %p143 = pneg %p142
      $region22: #{tpu_custom_call.1} parent=5 // pred_check_branch
        %145 = sbr.rel (%p143) target = $region24
      $region23: #{tpu_custom_call.1} parent=5 // pred_region
        // Predicated region
        $region25: #{tpu_custom_call.1} parent=23 // pred_check
          %p146 = pneg %p36
        $region26: #{tpu_custom_call.1} parent=23 // pred_check_branch
          %148 = sbr.rel (%p146) target = $region28
        $region27: #{tpu_custom_call.1} parent=23 // pred_region
          %s149 = sand.u32 %s26, 1
          %s150 = scalar_lea.sflag [#allocation3], %s149
          %s151 = sand.u32 %s26, 1
          %s152 = smul.addr %s151, 8
          %s153 = scalar_lea.vmem [#allocation2], %s152
          %155 = vsyncadd %s150, 0
          %s156 = smul.addr %s16, 8
          %s157 = scalar_lea.hbm %s0, %s156
          %s159 = sshll.u32 %s157, 4
          %s160 = int_to_ptr.hbm [resolvable:$true] %s159
          %s161 = sshll.u32 %s153, 4
          %s162 = int_to_ptr.vmem [resolvable:$true] %s161
          %164 = dma.hbm_to_vmem [thread:$0]  %s160, 128, %s162, %s150
        $region28: #{tpu_custom_call.1} parent=23 // pred_fallthru
          _
      $region24: #{tpu_custom_call.1} parent=5 // pred_fallthru
        _
      %p165 = scmp.le.s32.totalorder 1, %s16
      %p166 = scmp.lt.s32.totalorder %s16, 3
      %p167 = pnand %p165, %p166
      %p168 = pneg %p167
      // Predicated region
      $region29: #{tpu_custom_call.1} parent=5 // pred_check
        _
      $region30: #{tpu_custom_call.1} parent=5 // pred_check_branch
        %170 = sbr.rel (%p167) target = $region32
      $region31: #{tpu_custom_call.1} parent=5 // pred_region
        %s171 = ssub.s32 %s16, 1
        %s172 = sand.u32 %s29, 1
        %s173 = scalar_lea.sflag [#allocation3], %s172
        %s174 = sand.u32 %s29, 1
        %s175 = smul.addr %s174, 8
        %s176 = scalar_lea.vmem [#allocation2], %s175
        // Predicated region
        $region33: #{tpu_custom_call.1} parent=31 // pred_check
          %p177 = pneg %p42
        $region34: #{tpu_custom_call.1} parent=31 // pred_check_branch
          %179 = sbr.rel (%p177) target = $region36
        $region35: #{tpu_custom_call.1} parent=31 // pred_region
          %181 = dma.done %s173, 128
        $region36: #{tpu_custom_call.1} parent=31 // pred_fallthru
          _
        // Predicated region
        $region37: #{tpu_custom_call.1} parent=31 // pred_check
          %p182 = pneg %p63
        $region38: #{tpu_custom_call.1} parent=31 // pred_check_branch
          %184 = sbr.rel (%p182) target = $region40
        $region39: #{tpu_custom_call.1} parent=31 // pred_region
          %186 = dma.done [#allocation6], 2048
        $region40: #{tpu_custom_call.1} parent=31 // pred_fallthru
          _
        %s187 = sand.u32 %s29, 1
        %s188 = scalar_lea.sflag [#allocation3], %s187
        %s189 = sand.u32 %s29, 1
        %s190 = smul.addr %s189, 8
        %s191 = scalar_lea.vmem [#allocation2], %s190
        %p192 = pneg %p42
        %p193 = pneg %p39
        %p194 = pneg %p63
        %p195 = pneg %p60
        %p196 = pneg %p84
        %p197 = pneg %p81
        %p198 = pneg %p110
        %p199 = pneg %p107
        %s200 = sand.u32 %s97, 1
        %s201 = scalar_lea.sflag [#allocation4], %s200
        %s202 = sand.u32 %s97, 1
        %s203 = smul.addr %s202, 8
        %s204 = scalar_lea.vmem [#allocation7], %s203
        %v205 = vld [vmem:[%s176] sm:$0xff]
        %v206 = vld [vmem:[#allocation5] sm:$0xff]
        %v207 = vld [vmem:[#allocation5 + $0x8] sm:$0xff]
        %v208 = vld [vmem:[#allocation5 + $0x10] sm:$0xff]
        %v209 = vld [vmem:[#allocation5 + $0x18] sm:$0xff]
        %v210 = vld [vmem:[#allocation5 + $0x20] sm:$0xff]
        %v211 = vld [vmem:[#allocation5 + $0x28] sm:$0xff]
        %v212 = vld [vmem:[#allocation5 + $0x30] sm:$0xff]
        %v213 = vld [vmem:[#allocation5 + $0x38] sm:$0xff]
        %v214 = vld [vmem:[#allocation5 + $0x40] sm:$0xff]
        %v215 = vld [vmem:[#allocation5 + $0x48] sm:$0xff]
        %v216 = vld [vmem:[#allocation5 + $0x50] sm:$0xff]
        %v217 = vld [vmem:[#allocation5 + $0x58] sm:$0xff]
        %v218 = vld [vmem:[#allocation5 + $0x60] sm:$0xff]
        %v219 = vld [vmem:[#allocation5 + $0x68] sm:$0xff]
        %v220 = vld [vmem:[#allocation5 + $0x70] sm:$0xff]
        %v221 = vld [vmem:[#allocation5 + $0x78] sm:$0xff]
        %v222 = vld [vmem:[%s2] sm:$0x1]
        %v224 = vperm.slane %v222, 0
        %226 = vmatpush.msra.mxu0 %v221
        %227 = vmatpush.msra.mxu0 %v220
        %228 = vmatpush.msra.mxu0 %v219
        %229 = vmatpush.msra.mxu0 %v218
        %230 = vmatpush.msra.mxu0 %v217
        %231 = vmatpush.msra.mxu0 %v216
        %232 = vmatpush.msra.mxu0 %v215
        %233 = vmatpush.msra.mxu0 %v214
        %234 = vmatpush.msra.mxu0 %v213
        %235 = vmatpush.msra.mxu0 %v212
        %236 = vmatpush.msra.mxu0 %v211
        %237 = vmatpush.msra.mxu0 %v210
        %238 = vmatpush.msra.mxu0 %v209
        %239 = vmatpush.msra.mxu0 %v208
        %240 = vmatpush.msra.mxu0 %v207
        %241 = vmatpush.msra.mxu0 %v206
        %242 = vmatmul.f32.gmra.mxu0 %v205
        %v243 = vpop.f32.mrf.mxu0
        %v244 = vadd.f32 %v224, %v243
        %245 = vdwg.mxu0
        %v246 = vadd.f32 %v244, %v205
        %247 = vst [vmem:[%s204] sm:$0xff] %v246
        %s248 = sand.u32 %s97, 1
        %s249 = scalar_lea.sflag [#allocation4], %s248
        %s250 = sand.u32 %s97, 1
        %s251 = smul.addr %s250, 8
        %s252 = scalar_lea.vmem [#allocation7], %s251
        // Predicated region
        $region41: #{tpu_custom_call.1} parent=31 // pred_check
          %p253 = pneg %p107
        $region42: #{tpu_custom_call.1} parent=31 // pred_check_branch
          %255 = sbr.rel (%p253) target = $region44
        $region43: #{tpu_custom_call.1} parent=31 // pred_region
          %257 = vsyncadd %s249, 0
          %s258 = smul.addr %s21, 8
          %s259 = scalar_lea.hbm %s3, %s258
          %s261 = sshll.u32 %s252, 4
          %s262 = int_to_ptr.vmem [resolvable:$true] %s261
          %s263 = sshll.u32 %s259, 4
          %s264 = int_to_ptr.hbm [resolvable:$true] %s263
          %266 = dma.vmem_to_hbm [thread:$0]  %s262, 128, %s264, %s249
        $region44: #{tpu_custom_call.1} parent=31 // pred_fallthru
          _
      $region32: #{tpu_custom_call.1} parent=5 // pred_fallthru
        _
      %p267 = scmp.le.s32.totalorder 2, %s16
      // Predicated region
      $region45: #{tpu_custom_call.1} parent=5 // pred_check
        %p268 = pneg %p267
      $region46: #{tpu_custom_call.1} parent=5 // pred_check_branch
        %270 = sbr.rel (%p268) target = $region48
      $region47: #{tpu_custom_call.1} parent=5 // pred_region
        %s271 = ssub.s32 %s16, 2
        // Predicated region
        $region49: #{tpu_custom_call.1} parent=47 // pred_check
          %p272 = pneg %p113
        $region50: #{tpu_custom_call.1} parent=47 // pred_check_branch
          %274 = sbr.rel (%p272) target = $region52
        $region51: #{tpu_custom_call.1} parent=47 // pred_region
          %s275 = sand.u32 %s98, 1
          %s276 = scalar_lea.sflag [#allocation4], %s275
          %s277 = sand.u32 %s98, 1
          %s278 = smul.addr %s277, 8
          %s279 = scalar_lea.vmem [#allocation7], %s278
          %281 = dma.done %s276, 128
        $region52: #{tpu_custom_call.1} parent=47 // pred_fallthru
          _
      $region48: #{tpu_custom_call.1} parent=5 // pred_fallthru
        _
    $region6: #{tpu_custom_call.1} parent=1 // loop_footer
      %s20 = sadd.s32 1, %s16
    $region7: #{tpu_custom_call.1} parent=1 // loop_footer_branch
      %15 = sbr.rel target = $region3
    $region8: #{tpu_custom_call.1} parent=1 // loop_exit
      _
    %282 = vsyncpa [#allocation3], 1
    %s283 = scalar_lea.sflag [#allocation3], 1
    %284 = vsyncpa %s283, 1
    %285 = vsyncpa [#allocation6], 1
    %286 = vsyncpa [#allocation4], 1
    %s287 = scalar_lea.sflag [#allocation4], 1
    %288 = vsyncpa %s287, 1

</llo_original>
